<compile_context>
chip_gen: v7x
topology: tpu7x:2x2x1
jax: 0.10.0
libtpu: 0.0.40
codegen_flags: <defaults>
</compile_context>

<pallas_src>
import functools

import jax
import jax.numpy as jnp
from jax.experimental import pallas as pl
from jax.experimental.pallas import tpu as pltpu


# ------------------------------ Pallas kernel ------------------------------ #

def fcn_loss_kernel(cls_ref, box_ref, d1_ref, d2_ref, out_ref, *, n_true):
    logits = cls_ref[...]          # (Np, C) f32
    labels = d1_ref[...]           # (Np, 1) i32   (-1 = ignore)
    box = box_ref[...]             # (Np, 4) f32
    tgt = d2_ref[...]              # (Np, 4) f32

    n_pad, n_cls = logits.shape

    # ---- loss1: cross entropy with ignore_index = -1 (mean over valid rows) ----
    class_ids = jax.lax.broadcasted_iota(jnp.int32, (n_pad, n_cls), 1)
    onehot = (class_ids == labels).astype(jnp.float32)        # label -1 -> all-zero row
    picked = jnp.sum(logits * onehot, axis=1, keepdims=True)  # (Np, 1) target logit

    m = jnp.max(logits, axis=1, keepdims=True)
    lse = m + jnp.log(jnp.sum(jnp.exp(logits - m), axis=1, keepdims=True))
    ce = lse - picked                                          # (Np, 1) per-row CE

    valid = (labels != -1).astype(jnp.float32)                 # (Np, 1)
    ce_sum = jnp.sum(ce * valid, keepdims=True)                # (1, 1)
    n_valid = jnp.sum(valid, keepdims=True)                    # (1, 1)
    loss1 = ce_sum / n_valid                                   # NaN if all ignored (== torch)

    # ---- loss2: masked per-sample MSE, mean over the TRUE batch size ----
    mask = (labels != 0).astype(jnp.float32)                   # (Np, 1)
    mse = jnp.mean((box - tgt) ** 2, axis=1, keepdims=True)    # (Np, 1)
    loss2 = jnp.sum(mse * mask, keepdims=True) * (1.0 / float(n_true))  # (1, 1)

    out_ref[...] = loss1 + loss2


_VMEM = pl.BlockSpec(memory_space=pltpu.MemorySpace.VMEM)


# ------------------------------- JAX wrapper -------------------------------- #

@jax.jit
def fcn_loss(cls, box, d1, d2):
    """cls: (N, 2[,1,1]), box: (N, 4[,1,1]), d1: (N,) int, d2: (N, 4) -> scalar loss."""
    n = cls.shape[0]
    cls2 = cls.reshape(n, -1).astype(jnp.float32)   # torch .squeeze() for (N,2,1,1)
    box2 = box.reshape(n, -1).astype(jnp.float32)   # torch .squeeze() for (N,4,1,1)
    d2_2 = d2.reshape(n, -1).astype(jnp.float32)
    d1_2 = d1.reshape(n, 1).astype(jnp.int32)

    # Pad batch rows to full 8-row sublanes (ignore-padded labels, zero-padded data).
    n_pad = pl.cdiv(n, 8) * 8
    pad = n_pad - n
    if pad:
        cls2 = jnp.pad(cls2, ((0, pad), (0, 0)))
        box2 = jnp.pad(box2, ((0, pad), (0, 0)))
        d2_2 = jnp.pad(d2_2, ((0, pad), (0, 0)))
        d1_2 = jnp.pad(d1_2, ((0, pad), (0, 0)), constant_values=-1)

    out = pl.pallas_call(
        functools.partial(fcn_loss_kernel, n_true=n),
        out_shape=jax.ShapeDtypeStruct((1, 1), jnp.float32),
        in_specs=[_VMEM, _VMEM, _VMEM, _VMEM],
        out_specs=_VMEM,
    )(cls2, box2, d1_2, d2_2)
    return out[0, 0]


# ---------------------------- pure-JAX reference ---------------------------- #

def fcn_loss_ref(cls, box, d1, d2):
    cls = jnp.squeeze(cls)
    box = jnp.squeeze(box)
    logp = jax.nn.log_softmax(cls, axis=-1)
    safe = jnp.clip(d1, 0, cls.shape[-1] - 1)
    ce = -jnp.take_along_axis(logp, safe[:, None], axis=1)[:, 0]
    valid = (d1 != -1).astype(jnp.float32)
    loss1 = jnp.sum(ce * valid) / jnp.sum(valid)
    mask = (d1 != 0).astype(jnp.float32)
    loss2 = jnp.mean(((box - d2) ** 2).mean(axis=1) * mask)
    return loss1 + loss2


if __name__ == "__main__":
    key = jax.random.PRNGKey(0)
    k1, k2, k3 = jax.random.split(key, 3)

    n = 14  # deliberately NOT a multiple of 8 to exercise the sublane padding path
    cls = jax.random.normal(k1, (n, 2, 1, 1), jnp.float32)   # classification head
    box = jax.random.normal(k2, (n, 4, 1, 1), jnp.float32)   # bbox-regression head
    # labels in {-1 ignored, 0 negative, 1 positive}; fixed deterministic pattern
    d1 = jnp.array([1, 0, -1, 1, 0, 1, -1] * 2, dtype=jnp.int32)
    d2 = jax.random.normal(k3, (n, 4), jnp.float32)          # bbox targets

    loss = fcn_loss(cls, box, d1, d2)
    loss = jax.block_until_ready(loss)

    ref = fcn_loss_ref(cls, box, d1, d2)
    assert bool(jnp.isfinite(loss)), loss
    assert bool(jnp.allclose(loss, ref, rtol=1e-5, atol=1e-5)), (float(loss), float(ref))
    print("KERNEL_OK")
</pallas_src>

<mosaic_0001>
module attributes {stable_mosaic.version = 11 : i64} {
  func.func @fcn_loss_kernel(%arg0: memref<16x2xf32, #tpu.memory_space<vmem>>, %arg1: memref<16x4xf32, #tpu.memory_space<vmem>>, %arg2: memref<16x1xi32, #tpu.memory_space<vmem>>, %arg3: memref<16x4xf32, #tpu.memory_space<vmem>>, %arg4: memref<1x1xf32, #tpu.memory_space<vmem>>) attributes {dimension_semantics = [], scalar_prefetch = 0 : i64, scratch_operands = 0 : i64, tpu.core_type = #tpu.core_type<tc>} {
    %c0 = arith.constant 0 : index
    %c0_0 = arith.constant 0 : index
    %0 = vector.load %arg0[%c0, %c0_0] : memref<16x2xf32, #tpu.memory_space<vmem>>, vector<16x2xf32>
    %c0_1 = arith.constant 0 : index
    %c0_2 = arith.constant 0 : index
    %1 = vector.load %arg2[%c0_1, %c0_2] : memref<16x1xi32, #tpu.memory_space<vmem>>, vector<16x1xi32>
    %c0_3 = arith.constant 0 : index
    %c0_4 = arith.constant 0 : index
    %2 = vector.load %arg1[%c0_3, %c0_4] : memref<16x4xf32, #tpu.memory_space<vmem>>, vector<16x4xf32>
    %c0_5 = arith.constant 0 : index
    %c0_6 = arith.constant 0 : index
    %3 = vector.load %arg3[%c0_5, %c0_6] : memref<16x4xf32, #tpu.memory_space<vmem>>, vector<16x4xf32>
    %4 = tpu.iota {dimensions = array<i32: 1>} : vector<16x2xi32>
    %5 = vector.broadcast %1 : vector<16x1xi32> to vector<16x2xi32>
    %6 = arith.cmpi eq, %4, %5 : vector<16x2xi32>
    %7 = arith.extui %6 : vector<16x2xi1> to vector<16x2xi32>
    %8 = arith.sitofp %7 : vector<16x2xi32> to vector<16x2xf32>
    %9 = arith.mulf %0, %8 : vector<16x2xf32>
    %cst = arith.constant dense<0.000000e+00> : vector<16xf32>
    %10 = vector.multi_reduction <add>, %9, %cst [1] : vector<16x2xf32> to vector<16xf32>
    %11 = vector.shape_cast %10 : vector<16xf32> to vector<16x1xf32>
    %cst_7 = arith.constant dense<0xFF800000> : vector<16xf32>
    %12 = vector.multi_reduction <maximumf>, %0, %cst_7 [1] : vector<16x2xf32> to vector<16xf32>
    %13 = vector.shape_cast %12 : vector<16xf32> to vector<16x1xf32>
    %14 = vector.broadcast %13 : vector<16x1xf32> to vector<16x2xf32>
    %15 = arith.subf %0, %14 : vector<16x2xf32>
    %16 = math.exp %15 : vector<16x2xf32>
    %cst_8 = arith.constant dense<0.000000e+00> : vector<16xf32>
    %17 = vector.multi_reduction <add>, %16, %cst_8 [1] : vector<16x2xf32> to vector<16xf32>
    %18 = vector.shape_cast %17 : vector<16xf32> to vector<16x1xf32>
    %19 = math.log %18 : vector<16x1xf32>
    %20 = arith.addf %13, %19 : vector<16x1xf32>
    %21 = arith.subf %20, %11 : vector<16x1xf32>
    %c-1_i32 = arith.constant -1 : i32
    %22 = vector.broadcast %c-1_i32 : i32 to vector<16x1xi32>
    %23 = arith.cmpi ne, %1, %22 : vector<16x1xi32>
    %24 = arith.extui %23 : vector<16x1xi1> to vector<16x1xi32>
    %25 = arith.sitofp %24 : vector<16x1xi32> to vector<16x1xf32>
    %26 = arith.mulf %21, %25 : vector<16x1xf32>
    %27 = vector.shape_cast %26 : vector<16x1xf32> to vector<1x16x1xf32>
    %cst_9 = arith.constant dense<0.000000e+00> : vector<1xf32>
    %28 = vector.multi_reduction <add>, %27, %cst_9 [1, 2] : vector<1x16x1xf32> to vector<1xf32>
    %29 = vector.shape_cast %28 : vector<1xf32> to vector<1x1x1xf32>
    %30 = vector.extract %29[0, 0, 0] : f32 from vector<1x1x1xf32>
    %31 = vector.broadcast %30 : f32 to vector<1x1xf32>
    %32 = vector.shape_cast %25 : vector<16x1xf32> to vector<1x16x1xf32>
    %cst_10 = arith.constant dense<0.000000e+00> : vector<1xf32>
    %33 = vector.multi_reduction <add>, %32, %cst_10 [1, 2] : vector<1x16x1xf32> to vector<1xf32>
    %34 = vector.shape_cast %33 : vector<1xf32> to vector<1x1x1xf32>
    %35 = vector.extract %34[0, 0, 0] : f32 from vector<1x1x1xf32>
    %36 = vector.broadcast %35 : f32 to vector<1x1xf32>
    %37 = arith.divf %31, %36 : vector<1x1xf32>
    %c0_i32 = arith.constant 0 : i32
    %38 = vector.broadcast %c0_i32 : i32 to vector<16x1xi32>
    %39 = arith.cmpi ne, %1, %38 : vector<16x1xi32>
    %40 = arith.extui %39 : vector<16x1xi1> to vector<16x1xi32>
    %41 = arith.sitofp %40 : vector<16x1xi32> to vector<16x1xf32>
    %42 = arith.subf %2, %3 : vector<16x4xf32>
    %43 = arith.mulf %42, %42 : vector<16x4xf32>
    %cst_11 = arith.constant dense<0.000000e+00> : vector<16xf32>
    %44 = vector.multi_reduction <add>, %43, %cst_11 [1] : vector<16x4xf32> to vector<16xf32>
    %45 = vector.shape_cast %44 : vector<16xf32> to vector<16x1xf32>
    %cst_12 = arith.constant 4.000000e+00 : f32
    %46 = vector.broadcast %cst_12 : f32 to vector<16x1xf32>
    %47 = arith.divf %45, %46 : vector<16x1xf32>
    %48 = arith.mulf %47, %41 : vector<16x1xf32>
    %49 = vector.shape_cast %48 : vector<16x1xf32> to vector<1x16x1xf32>
    %cst_13 = arith.constant dense<0.000000e+00> : vector<1xf32>
    %50 = vector.multi_reduction <add>, %49, %cst_13 [1, 2] : vector<1x16x1xf32> to vector<1xf32>
    %51 = vector.shape_cast %50 : vector<1xf32> to vector<1x1x1xf32>
    %52 = vector.extract %51[0, 0, 0] : f32 from vector<1x1x1xf32>
    %53 = vector.broadcast %52 : f32 to vector<1x1xf32>
    %cst_14 = arith.constant 0.0714285746 : f32
    %54 = vector.broadcast %cst_14 : f32 to vector<1x1xf32>
    %55 = arith.mulf %53, %54 : vector<1x1xf32>
    %56 = arith.addf %37, %55 : vector<1x1xf32>
    %c0_15 = arith.constant 0 : index
    %c0_16 = arith.constant 0 : index
    %57 = vector.load %arg4[%c0_15, %c0_16] : memref<1x1xf32, #tpu.memory_space<vmem>>, vector<1x1xf32>
    tpu.vector_store %arg4[%c0_15, %c0_16], %56 {strides = array<i32>} : memref<1x1xf32, #tpu.memory_space<vmem>>, vector<1x1xf32>,
    return
  }
}

</mosaic_0001>

<llo_original>
// kernel: fcn_loss.1
$region0: #{fcn_loss.1}
  #allocation0 [shape = 'u32[]', space=smem, size = 0x4, offset = 0x4, fixed_abs, tag = 'smem constant byte address 0x4 - core index']
  #allocation1 [shape = 'u32[144,128]{1,0:T(1,128)}', space=vmem, size = 0x12000, scoped, tag = 'internal scratch']
  %s0 = inlined_call_operand.vmem [shape: f32[16,2], index: 0, kind: input, shape index: {}]
  %s1 = inlined_call_operand.vmem [shape: f32[16,4], index: 1, kind: input, shape index: {}]
  %s2 = inlined_call_operand.vmem [shape: s32[16,1], index: 2, kind: input, shape index: {}]
  %s3 = inlined_call_operand.vmem [shape: f32[16,4], index: 3, kind: input, shape index: {}]
  %s4 = inlined_call_operand.hbm [shape: f32[1,1], index: 4, kind: output, shape index: {}]
  %s5 = sld [smem:[#allocation0]]
  $region26: #{fcn_loss.1} parent=0
    _
  %s7 = ssub.s32 1, %s5
  %s8 = scalar_select 0, %s7, %s5
  $region1: #{fcn_loss.1} parent=0
    #allocation2 [shape = 'u8[512]{0}', space=vmem, size = 0x400, scoped, tag = 'output window, operand 0, single buffered']
    #allocation3 [shape = 's32[1]{0}', space=sflag, size = 0x4, scoped, tag = 'scoped memory for fcn_loss.1']
    %9 = vsyncpa [#allocation3], 0
    // Predicated region
    $region2: #{fcn_loss.1} parent=1 // pred_check
      _
    $region3: #{fcn_loss.1} parent=1 // pred_check_branch
      %11 = sbr.rel (0) target = $region5
    $region4: #{fcn_loss.1} parent=1 // pred_region
      _
    $region5: #{fcn_loss.1} parent=1 // pred_fallthru
      _
    // Predicated region
    $region6: #{fcn_loss.1} parent=1 // pred_check
      _
    $region7: #{fcn_loss.1} parent=1 // pred_check_branch
      %13 = sbr.rel (0) target = $region9
    $region8: #{fcn_loss.1} parent=1 // pred_region
      _
    $region9: #{fcn_loss.1} parent=1 // pred_fallthru
      _
    // Predicated region
    $region10: #{fcn_loss.1} parent=1 // pred_check
      _
    $region11: #{fcn_loss.1} parent=1 // pred_check_branch
      %15 = sbr.rel (0) target = $region13
    $region12: #{fcn_loss.1} parent=1 // pred_region
      _
    $region13: #{fcn_loss.1} parent=1 // pred_fallthru
      _
    // Predicated region
    $region14: #{fcn_loss.1} parent=1 // pred_check
      _
    $region15: #{fcn_loss.1} parent=1 // pred_check_branch
      %17 = sbr.rel (0) target = $region17
    $region16: #{fcn_loss.1} parent=1 // pred_region
      _
    $region17: #{fcn_loss.1} parent=1 // pred_fallthru
      _
    %v18 = vld [vmem:[%s0] sm:$0xff]
    %v19 = vld [vmem:[%s0 + $0x8] sm:$0xff]
    %v20 = vld [vmem:[%s2] sm:$0xff]
    %v21 = vld [vmem:[%s2 + $0x8] sm:$0xff]
    %v22 = vld [vmem:[%s1] sm:$0xff]
    %v23 = vld [vmem:[%s1 + $0x8] sm:$0xff]
    %v24 = vld [vmem:[%s3] sm:$0xff]
    %v25 = vld [vmem:[%s3 + $0x8] sm:$0xff]
    %v26 = vlaneseq
    %v27 = vand.u32 %v26, 127
    %28 = vset.pattern.permute.xlu0 0
    %29 = vperm.xlu0 %28, %v20
    %v30 = vpop.permute.xlu0 %29
    %31 = vset.pattern.permute.xlu0 0
    %32 = vperm.xlu0 %31, %v21
    %v33 = vpop.permute.xlu0 %32
    %vm34 = vcmp.eq.s32.totalorder %v27, %v30
    %vm35 = vcmp.eq.s32.totalorder %v27, %v33
    %v36 = vsel %vm34, 1, 0
    %v37 = vsel %vm35, 1, 0
    %v38 = vcvt.s32.f32 %v36
    %v39 = vcvt.s32.f32 %v37
    %v40 = vmul.f32 %v18, %v38
    %v41 = vmul.f32 %v19, %v39
    %vm42 = vcmask 15360
    %v43 = vsel %vm42, %v40, 0.0
    %44 = vadd.xlane.f32.xlu0 %v43
    %v45 = vpop.xlane.xlu0 %44
    %v46 = vsel %vm42, %v41, 0.0
    %47 = vadd.xlane.f32.xlu0 %v46
    %v48 = vpop.xlane.xlu0 %47
    %v49 = vsel %vm42, %v18, -inf
    %50 = vmax.xlane.f32.xlu0 %v49
    %v51 = vpop.xlane.xlu0 %50
    %v52 = vsel %vm42, %v19, -inf
    %53 = vmax.xlane.f32.xlu0 %v52
    %v54 = vpop.xlane.xlu0 %53
    %v55 = vsub.f32 %v18, %v51
    %v56 = vsub.f32 %v19, %v54
    %v57 = vmul.f32 %v55, 1.442695
    %v58 = vpow.pop %v57
    %v59 = vmul.f32 %v56, 1.442695
    %v60 = vpow.pop %v59
    %v61 = vsel %vm42, %v58, 0.0
    %62 = vadd.xlane.f32.xlu0 %v61
    %v63 = vpop.xlane.xlu0 %62
    %v64 = vsel %vm42, %v60, 0.0
    %65 = vadd.xlane.f32.xlu0 %v64
    %v66 = vpop.xlane.xlu0 %65
    %v67 = vlog2.pop %v63
    %v68 = vmul.f32 %v67, 0.6931472
    %v69 = vlog2.pop %v66
    %v70 = vmul.f32 %v69, 0.6931472
    %v71 = vadd.f32 %v51, %v68
    %v72 = vadd.f32 %v54, %v70
    %v73 = vsub.f32 %v71, %v45
    %v74 = vsub.f32 %v72, %v48
    %vm75 = vcmp.ne.s32.totalorder %v20, 4294967295
    %vm76 = vcmp.ne.s32.totalorder %v21, 4294967295
    %v77 = vsel %vm75, 1, 0
    %v78 = vsel %vm76, 1, 0
    %v79 = vcvt.s32.f32 %v77
    %v80 = vcvt.s32.f32 %v78
    %v81 = vmul.f32 %v73, %v79
    %v82 = vmul.f32 %v74, %v80
    %vm83 = vcmask 7168
    %v84 = vsel %vm83, %v81, 0.0
    %v85 = vsel %vm83, %v82, 0.0
    %v86 = vadd.f32 %v84, %v85
    %87 = vadd.xlane.f32.xlu0 %v86
    %v88 = vpop.xlane.xlu0 %87
    %v89 = vrot.slane %v88, 4
    %v90 = vadd.f32 %v88, %v89
    %v91 = vrot.slane %v90, 2
    %v92 = vadd.f32 %v90, %v91
    %v93 = vrot.slane %v92, 1
    %v94 = vadd.f32 %v92, %v93
    %s95 = vtos %v94
    %v96 = vstv %s95
    %v97 = vsel %vm83, %v79, 0.0
    %v98 = vsel %vm83, %v80, 0.0
    %v99 = vadd.f32 %v97, %v98
    %100 = vadd.xlane.f32.xlu0 %v99
    %v101 = vpop.xlane.xlu0 %100
    %v102 = vrot.slane %v101, 4
    %v103 = vadd.f32 %v101, %v102
    %v104 = vrot.slane %v103, 2
    %v105 = vadd.f32 %v103, %v104
    %v106 = vrot.slane %v105, 1
    %v107 = vadd.f32 %v105, %v106
    %s108 = vtos %v107
    %v109 = vstv %s108
    %v110 = vrcp.pop %v109
    %v111 = vmul.f32 %v96, %v110
    %vm112 = vcmp.ne.s32.totalorder %v20, 0
    %vm113 = vcmp.ne.s32.totalorder %v21, 0
    %v114 = vsel %vm112, 1, 0
    %v115 = vsel %vm113, 1, 0
    %v116 = vcvt.s32.f32 %v114
    %v117 = vcvt.s32.f32 %v115
    %v118 = vsub.f32 %v22, %v24
    %v119 = vsub.f32 %v23, %v25
    %v120 = vmul.f32 %v118, %v118
    %v121 = vmul.f32 %v119, %v119
    %vm122 = vcmask 31744
    %v123 = vsel %vm122, %v120, 0.0
    %124 = vadd.xlane.f32.xlu0 %v123
    %v125 = vpop.xlane.xlu0 %124
    %v126 = vsel %vm122, %v121, 0.0
    %127 = vadd.xlane.f32.xlu0 %v126
    %v128 = vpop.xlane.xlu0 %127
    %v129 = vrcp.pop 4.0
    %v130 = vmul.f32 %v125, %v129
    %v131 = vmul.f32 %v128, %v129
    %v132 = vmul.f32 %v130, %v116
    %v133 = vmul.f32 %v131, %v117
    %v134 = vsel %vm83, %v132, 0.0
    %v135 = vsel %vm83, %v133, 0.0
    %v136 = vadd.f32 %v134, %v135
    %137 = vadd.xlane.f32.xlu0 %v136
    %v138 = vpop.xlane.xlu0 %137
    %v139 = vrot.slane %v138, 4
    %v140 = vadd.f32 %v138, %v139
    %v141 = vrot.slane %v140, 2
    %v142 = vadd.f32 %v140, %v141
    %v143 = vrot.slane %v142, 1
    %v144 = vadd.f32 %v142, %v143
    %s145 = vtos %v144
    %v146 = vstv %s145
    %v147 = vmul.f32 %v146, 0.071428575
    %v148 = vadd.f32 %v111, %v147
    %vm149 = vcmask 0
    %150 = vst.msk [vmem:[#allocation2] sm:$0x1] %vm149, %v148
    // Predicated region
    $region18: #{fcn_loss.1} parent=1 // pred_check
      _
    $region19: #{fcn_loss.1} parent=1 // pred_check_branch
      %152 = sbr.rel (0) target = $region21
    $region20: #{fcn_loss.1} parent=1 // pred_region
      %s154 = ssub.s32 16, 16
      %155 = vsyncadd [#allocation3], %s154
      %s157 = sshll.u32 [#allocation2], 4
      %s158 = int_to_ptr.vmem [resolvable:$true] %s157
      %160 = dma.vmem_to_hbm [thread:$0]  %s158, 16, %s4, [#allocation3]
    $region21: #{fcn_loss.1} parent=1 // pred_fallthru
      _
    // Predicated region
    $region22: #{fcn_loss.1} parent=1 // pred_check
      _
    $region23: #{fcn_loss.1} parent=1 // pred_check_branch
      %162 = sbr.rel (0) target = $region25
    $region24: #{fcn_loss.1} parent=1 // pred_region
      %163 = dma.done [#allocation3], 16
    $region25: #{fcn_loss.1} parent=1 // pred_fallthru
      _
    %164 = vsyncpa [#allocation3], 1

</llo_original>
